<compile_context>
chip_gen: v7x
topology: tpu7x:2x2x1
jax: 0.10.0
libtpu: 0.0.40
codegen_flags: <defaults>
</compile_context>

<pallas_src>
import functools

import jax
import jax.numpy as jnp
import numpy as np
from jax.experimental import pallas as pl
from jax.experimental.pallas import tpu as pltpu

_LANE = 128


def _round_up(x, m):
    return ((x + m - 1) // m) * m


def _largest_divisor_leq(n, cap):
    cap = max(1, min(cap, n))
    for d in range(cap, 0, -1):
        if n % d == 0:
            return d
    return 1


def _chip_params():
    """(tile_budget_bytes, max_cols, vmem_limit_bytes) sized from the chip's VMEM."""
    cap = 64 * 1024 * 1024                       # conservative (v7x) if query fails
    try:
        cap = int(pltpu.get_tpu_info().vmem_capacity_bytes)
    except Exception:
        pass
    if cap >= 100 * 1024 * 1024:                 # v5e / v6e class: 128 MiB VMEM
        return 40 * 1024 * 1024, 4096, 64 * 1024 * 1024
    return 12 * 1024 * 1024, 2048, 32 * 1024 * 1024   # v7x: 64 MiB (32 MiB scoped)


def _pointwise_kernel(x_ref, w_ref, b_ref, o_ref, *, compute_dtype):
    # x_ref: (B_BLK, C_in, TILE) lane-dense; w_ref: (CO_TILE, C_in); b_ref: (CO_TILE, 1) f32.
    w = w_ref[...]
    b = b_ref[...]
    for i in range(x_ref.shape[0]):              # static unroll over the small batch block
        xi = x_ref[i]
        if compute_dtype is not None:
            xi = xi.astype(compute_dtype)        # optional bf16 MXU path, f32 accumulation
        acc = jnp.dot(w, xi, preferred_element_type=jnp.float32) + b
        o_ref[i] = acc.astype(o_ref.dtype)


def _pointwise_conv_flat(x_flat, w_eff, b_eff, *, compute_dtype=None):
    """out[n] = w_eff @ x_flat[n] + b_eff, tiled lane-dense over the last axis."""
    n, c_in, p = x_flat.shape
    c_out = w_eff.shape[0]
    itemsize = x_flat.dtype.itemsize
    budget, max_cols, vmem_limit = _chip_params()

    # Pad the spatial axis only to the next multiple of 128 (zero cost when already aligned).
    p_pad = _round_up(p, _LANE)
    if p_pad != p:
        x_flat = jnp.pad(x_flat, ((0, 0), (0, 0), (0, p_pad - p)))

    # Output-channel tiling (MXU-native 256 blocks) for very wide pointwise convs.
    co_tile = c_out
    if c_out > 256:
        if c_out % 256 == 0:
            co_tile = 256
        elif c_out % 128 == 0:
            co_tile = 128
    n_co = c_out // co_tile

    # VMEM budget: double-buffered x/out tiles + (conservatively double-buffered) weights.
    w_bytes = 2 * co_tile * (c_in * itemsize + 4)
    per_col = 2 * (c_in + co_tile) * itemsize            # per batch-row, per lane column
    avail = max(budget - w_bytes, per_col * _LANE)
    cap_cols = max(_LANE, min(max_cols, avail // per_col))

    # Spatial tile = largest 128-multiple divisor of p_pad within the column budget,
    # so no padding/slicing beyond the 128 alignment is ever needed.
    tile = _LANE * _largest_divisor_leq(p_pad // _LANE, cap_cols // _LANE)

    # Small spatial maps: pack several images into one grid step (lane density and
    # fewer ~0.35us grid steps); cap the in-kernel unroll at 8 images.
    b_blk = 1
    if tile == p_pad:
        b_blk = _largest_divisor_leq(n, min(8, max(1, cap_cols // p_pad)))

    # Guarantee >=2 grid steps so both v7x TensorCores get work.
    if (n // b_blk) * (p_pad // tile) * n_co == 1:
        if b_blk > 1:
            b_blk //= 2
        elif tile % 256 == 0:
            tile //= 2

    grid = (n // b_blk, p_pad // tile, n_co)             # C_out innermost: x block stays resident

    x_spec = pl.BlockSpec((b_blk, c_in, tile), lambda i, k, j: (i, 0, k))
    o_spec = pl.BlockSpec((b_blk, co_tile, tile), lambda i, k, j: (i, j, k))
    kernel = functools.partial(_pointwise_kernel, compute_dtype=compute_dtype)

    def run(single_buffer_consts):
        # Constant-index weight/bias blocks stay VMEM-resident; single-buffer them to
        # free VMEM for the spatial tile (fallback to default buffering if unsupported).
        kw = dict(pipeline_mode=pl.Buffered(1)) if single_buffer_consts else {}
        w_spec = pl.BlockSpec((co_tile, c_in), lambda i, k, j: (j, 0), **kw)
        b_spec = pl.BlockSpec((co_tile, 1), lambda i, k, j: (j, 0), **kw)
        return pl.pallas_call(
            kernel,
            out_shape=jax.ShapeDtypeStruct((n, c_out, p_pad), x_flat.dtype),
            grid=grid,
            in_specs=[x_spec, w_spec, b_spec],
            out_specs=o_spec,
            compiler_params=pltpu.CompilerParams(
                dimension_semantics=("parallel", "parallel", "parallel"),
                vmem_limit_bytes=vmem_limit,
            ),
        )(x_flat, w_eff, b_eff)

    try:
        out = run(True)
    except Exception:      # pl.Buffered(1) not supported by this jax/Mosaic version
        out = run(False)

    return out[:, :, :p] if p_pad != p else out


def _tap_loop_kernel(x_ref, dw_ref, pw_ref, b_ref, o_ref, *, k, stride, h_out, w_out):
    # Fallback for kernel_size > 1: one padded image per grid step.
    # TODO(synk): tile H with a halo and use pltpu.roll for the kw taps so large images
    # don't have to fit VMEM whole and DMA overlaps compute within an image.
    x = x_ref[...]                                       # (C_in, H_pad, W_pad)
    c_in = x.shape[0]
    dw = dw_ref[...]                                     # (C_in, K*K)
    y = None
    for t in range(k * k):
        kh, kw = divmod(t, k)
        xs = x[:, kh:kh + stride * (h_out - 1) + 1:stride,
                  kw:kw + stride * (w_out - 1) + 1:stride]
        tap = xs * dw[:, t:t + 1].reshape(c_in, 1, 1)
        y = tap if y is None else y + tap
    # Depthwise bias is already folded into b_ref by the wrapper.
    y_flat = y.reshape(c_in, h_out * w_out)
    out = jnp.dot(pw_ref[...], y_flat, preferred_element_type=jnp.float32) + b_ref[...]
    o_ref[...] = out.astype(o_ref.dtype)


def depthwise_separable_conv(x, dw_w, dw_b, pw_w, pw_b, *,
                             kernel_size=1, padding=0, stride=1,
                             use_bf16_matmul=False):
    """x: (N, C_in, H, W) NCHW; dw_w: (C_in, 1, K, K); dw_b: (C_in,);
    pw_w: (C_out, C_in, 1, 1); pw_b: (C_out,)."""
    n, c_in, h, w = x.shape
    c_out = pw_w.shape[0]
    f32 = jnp.float32

    pw_w2 = pw_w.reshape(c_out, c_in).astype(f32)
    # Fold the depthwise bias through the pointwise conv (exact, elementwise f32):
    #   point(depth(x)) = pw_w @ dw(x) + (pw_w @ dw_b + pw_b)
    b_eff = (jnp.sum(pw_w2 * dw_b.astype(f32)[None, :], axis=1, keepdims=True)
             + pw_b.astype(f32).reshape(c_out, 1))

    compute_dtype = jnp.bfloat16 if (use_bf16_matmul and x.dtype == jnp.float32) else None

    if kernel_size == 1:
        # K=1 depthwise is a per-channel scale -> fold into the pointwise weights; the
        # whole module becomes one channel contraction over lane-dense (C, H*W) tiles.
        w_dtype = compute_dtype if compute_dtype is not None else x.dtype
        w_eff = (pw_w2 * dw_w.reshape(1, c_in).astype(f32)).astype(w_dtype)
        x_eff = x
        if padding:
            x_eff = jnp.pad(x_eff, ((0, 0), (0, 0),
                                    (padding, padding), (padding, padding)))
        if stride != 1:
            x_eff = x_eff[:, :, ::stride, ::stride]      # K=1 strided conv == subsample
        h_out, w_out = x_eff.shape[2], x_eff.shape[3]
        out_flat = _pointwise_conv_flat(x_eff.reshape(n, c_in, h_out * w_out),
                                        w_eff, b_eff, compute_dtype=compute_dtype)
        return out_flat.reshape(n, c_out, h_out, w_out)

    # ---- general kernel_size > 1 fallback: one whole image per grid step. --------
    x_pad = x
    if padding:
        x_pad = jnp.pad(x, ((0, 0), (0, 0), (padding, padding), (padding, padding)))
    h_pad, w_pad = h + 2 * padding, w + 2 * padding
    h_out = (h_pad - kernel_size) // stride + 1
    w_out = (w_pad - kernel_size) // stride + 1

    dw_w2 = dw_w.reshape(c_in, kernel_size * kernel_size).astype(x.dtype)
    pw_w_k = pw_w2.astype(x.dtype)
    kernel = functools.partial(_tap_loop_kernel, k=kernel_size, stride=stride,
                               h_out=h_out, w_out=w_out)
    _, _, vmem_limit = _chip_params()
    out_flat = pl.pallas_call(
        kernel,
        out_shape=jax.ShapeDtypeStruct((n, c_out, h_out * w_out), x.dtype),
        grid=(n,),
        in_specs=[
            pl.BlockSpec((None, c_in, h_pad, w_pad), lambda i: (i, 0, 0, 0)),
            pl.BlockSpec((c_in, kernel_size * kernel_size), lambda i: (0, 0)),
            pl.BlockSpec((c_out, c_in), lambda i: (0, 0)),
            pl.BlockSpec((c_out, 1), lambda i: (0, 0)),
        ],
        out_specs=pl.BlockSpec((None, c_out, h_out * w_out), lambda i: (i, 0, 0)),
        compiler_params=pltpu.CompilerParams(
            dimension_semantics=("parallel",),
            vmem_limit_bytes=vmem_limit,
        ),
    )(x_pad, dw_w2, pw_w_k, b_eff)
    return out_flat.reshape(n, c_out, h_out, w_out)


if __name__ == "__main__":
    # Module defaults: kernel_size=1, padding=0, stride=1.
    N, C_IN, C_OUT, H, W = 2, 4, 8, 16, 16
    K, PAD, STRIDE = 1, 0, 1

    key = jax.random.PRNGKey(0)
    kx, k1, k2, k3, k4 = jax.random.split(key, 5)
    x = jax.random.normal(kx, (N, C_IN, H, W), dtype=jnp.float32)

    # Deterministic parameter init (uniform, roughly PyTorch-style fan-in bounds).
    bound_d = 1.0 / np.sqrt(1 * K * K)
    bound_p = 1.0 / np.sqrt(C_IN * 1 * 1)
    dw_w = jax.random.uniform(k1, (C_IN, 1, K, K), jnp.float32, -bound_d, bound_d)
    dw_b = jax.random.uniform(k2, (C_IN,), jnp.float32, -bound_d, bound_d)
    pw_w = jax.random.uniform(k3, (C_OUT, C_IN, 1, 1), jnp.float32, -bound_p, bound_p)
    pw_b = jax.random.uniform(k4, (C_OUT,), jnp.float32, -bound_p, bound_p)

    out = depthwise_separable_conv(x, dw_w, dw_b, pw_w, pw_b,
                                   kernel_size=K, padding=PAD, stride=STRIDE)
    out = jax.block_until_ready(out)
    assert out.shape == (N, C_OUT, H, W)

    # float64 numpy reference with exact module semantics (depthwise then pointwise).
    x64 = np.asarray(x, np.float64)
    dw64 = np.asarray(dw_w, np.float64).reshape(C_IN)
    db64 = np.asarray(dw_b, np.float64)
    pw64 = np.asarray(pw_w, np.float64).reshape(C_OUT, C_IN)
    pb64 = np.asarray(pw_b, np.float64)
    y64 = x64 * dw64[None, :, None, None] + db64[None, :, None, None]
    out_ref = np.einsum("oc,nchw->nohw", pw64, y64) + pb64[None, :, None, None]

    np.testing.assert_allclose(np.asarray(out), out_ref, rtol=1e-5, atol=1e-5)
    print("KERNEL_OK")
</pallas_src>

<mosaic_0001>
module attributes {stable_mosaic.version = 11 : i64} {
  func.func @_pointwise_kernel(%arg0: i32, %arg1: i32, %arg2: i32, %arg3: memref<1x4x256xf32, #tpu.memory_space<vmem>>, %arg4: memref<8x4xf32, #tpu.memory_space<vmem>>, %arg5: memref<8x1xf32, #tpu.memory_space<vmem>>, %arg6: memref<1x8x256xf32, #tpu.memory_space<vmem>>) attributes {dimension_semantics = [#tpu.dimension_semantics<parallel>, #tpu.dimension_semantics<parallel>, #tpu.dimension_semantics<parallel>], iteration_bounds = array<i64: 2, 1, 1>, scalar_prefetch = 0 : i64, scratch_operands = 0 : i64, tpu.core_type = #tpu.core_type<tc>, window_params = [{transform_indices = @transform_0, window_bounds = array<i64: 1, 4, 256>}, {pipeline_mode = #tpu.pipeline_mode<synchronous>, transform_indices = @transform_1, window_bounds = array<i64: 8, 4>}, {pipeline_mode = #tpu.pipeline_mode<synchronous>, transform_indices = @transform_2, window_bounds = array<i64: 8, 1>}, {transform_indices = @transform_3, window_bounds = array<i64: 1, 8, 256>}]} {
    %c0 = arith.constant 0 : index
    %c0_0 = arith.constant 0 : index
    %0 = vector.load %arg4[%c0, %c0_0] : memref<8x4xf32, #tpu.memory_space<vmem>>, vector<8x4xf32>
    %c0_1 = arith.constant 0 : index
    %c0_2 = arith.constant 0 : index
    %1 = vector.load %arg5[%c0_1, %c0_2] : memref<8x1xf32, #tpu.memory_space<vmem>>, vector<8x1xf32>
    %c0_3 = arith.constant 0 : index
    %c0_4 = arith.constant 0 : index
    %c0_5 = arith.constant 0 : index
    %2 = vector.load %arg3[%c0_3, %c0_4, %c0_5] : memref<1x4x256xf32, #tpu.memory_space<vmem>>, vector<1x4x256xf32>
    %3 = vector.shape_cast %2 : vector<1x4x256xf32> to vector<4x256xf32>
    %cst = arith.constant dense<0.000000e+00> : vector<8x256xf32>
    %4 = tpu.matmul %0, %3, %cst {dimension_numbers = #tpu.dot_dimension_numbers<[1], [0], [0], [1], [0, 0, 1, 1], [], []>} : vector<8x4xf32>, vector<4x256xf32>, vector<8x256xf32> -> vector<8x256xf32>
    %5 = vector.broadcast %1 : vector<8x1xf32> to vector<8x256xf32>
    %6 = arith.addf %4, %5 : vector<8x256xf32>
    %c0_6 = arith.constant 0 : index
    %c0_7 = arith.constant 0 : index
    %c0_8 = arith.constant 0 : index
    %7 = vector.load %arg6[%c0_6, %c0_7, %c0_8] : memref<1x8x256xf32, #tpu.memory_space<vmem>>, vector<1x8x256xf32>
    %8 = vector.shape_cast %7 : vector<1x8x256xf32> to vector<8x256xf32>
    %9 = vector.shape_cast %6 : vector<8x256xf32> to vector<1x8x256xf32>
    tpu.vector_store %arg6[%c0_6, %c0_7, %c0_8], %9 {strides = array<i32>} : memref<1x8x256xf32, #tpu.memory_space<vmem>>, vector<1x8x256xf32>,
    return
  }
  func.func @transform_0(%arg0: i32, %arg1: i32, %arg2: i32) -> (i32, i32, i32) {
    %c0_i32 = arith.constant 0 : i32
    %c0_i32_0 = arith.constant 0 : i32
    return %arg0, %c0_i32, %arg1 : i32, i32, i32
  }
  func.func @transform_1(%arg0: i32, %arg1: i32, %arg2: i32) -> (i32, i32) {
    %c0_i32 = arith.constant 0 : i32
    %c0_i32_0 = arith.constant 0 : i32
    return %arg2, %c0_i32 : i32, i32
  }
  func.func @transform_2(%arg0: i32, %arg1: i32, %arg2: i32) -> (i32, i32) {
    %c0_i32 = arith.constant 0 : i32
    %c0_i32_0 = arith.constant 0 : i32
    return %arg2, %c0_i32 : i32, i32
  }
  func.func @transform_3(%arg0: i32, %arg1: i32, %arg2: i32) -> (i32, i32, i32) {
    %c0_i32 = arith.constant 0 : i32
    return %arg0, %arg2, %arg1 : i32, i32, i32
  }
}

module attributes {stable_mosaic.version = 11 : i64} {
  func.func @_pointwise_kernel(%arg0: i32, %arg1: i32, %arg2: i32, %arg3: memref<1x4x256xf32, #tpu.memory_space<vmem>>, %arg4: memref<8x4xf32, #tpu.memory_space<vmem>>, %arg5: memref<8x1xf32, #tpu.memory_space<vmem>>, %arg6: memref<1x8x256xf32, #tpu.memory_space<vmem>>) attributes {dimension_semantics = [#tpu.dimension_semantics<parallel>, #tpu.dimension_semantics<parallel>, #tpu.dimension_semantics<parallel>], iteration_bounds = array<i64: 2, 1, 1>, scalar_prefetch = 0 : i64, scratch_operands = 0 : i64, tpu.core_type = #tpu.core_type<tc>, window_params = [{transform_indices = @transform_0, window_bounds = array<i64: 1, 4, 256>}, {transform_indices = @transform_1, window_bounds = array<i64: 8, 4>}, {transform_indices = @transform_2, window_bounds = array<i64: 8, 1>}, {transform_indices = @transform_3, window_bounds = array<i64: 1, 8, 256>}]} {
    %c0 = arith.constant 0 : index
    %c0_0 = arith.constant 0 : index
    %0 = vector.load %arg4[%c0, %c0_0] : memref<8x4xf32, #tpu.memory_space<vmem>>, vector<8x4xf32>
    %c0_1 = arith.constant 0 : index
    %c0_2 = arith.constant 0 : index
    %1 = vector.load %arg5[%c0_1, %c0_2] : memref<8x1xf32, #tpu.memory_space<vmem>>, vector<8x1xf32>
    %c0_3 = arith.constant 0 : index
    %c0_4 = arith.constant 0 : index
    %c0_5 = arith.constant 0 : index
    %2 = vector.load %arg3[%c0_3, %c0_4, %c0_5] : memref<1x4x256xf32, #tpu.memory_space<vmem>>, vector<1x4x256xf32>
    %3 = vector.shape_cast %2 : vector<1x4x256xf32> to vector<4x256xf32>
    %cst = arith.constant dense<0.000000e+00> : vector<8x256xf32>
    %4 = tpu.matmul %0, %3, %cst {dimension_numbers = #tpu.dot_dimension_numbers<[1], [0], [0], [1], [0, 0, 1, 1], [], []>} : vector<8x4xf32>, vector<4x256xf32>, vector<8x256xf32> -> vector<8x256xf32>
    %5 = vector.broadcast %1 : vector<8x1xf32> to vector<8x256xf32>
    %6 = arith.addf %4, %5 : vector<8x256xf32>
    %c0_6 = arith.constant 0 : index
    %c0_7 = arith.constant 0 : index
    %c0_8 = arith.constant 0 : index
    %7 = vector.load %arg6[%c0_6, %c0_7, %c0_8] : memref<1x8x256xf32, #tpu.memory_space<vmem>>, vector<1x8x256xf32>
    %8 = vector.shape_cast %7 : vector<1x8x256xf32> to vector<8x256xf32>
    %9 = vector.shape_cast %6 : vector<8x256xf32> to vector<1x8x256xf32>
    tpu.vector_store %arg6[%c0_6, %c0_7, %c0_8], %9 {strides = array<i32>} : memref<1x8x256xf32, #tpu.memory_space<vmem>>, vector<1x8x256xf32>,
    return
  }
  func.func @transform_0(%arg0: i32, %arg1: i32, %arg2: i32) -> (i32, i32, i32) {
    %c0_i32 = arith.constant 0 : i32
    %c0_i32_0 = arith.constant 0 : i32
    return %arg0, %c0_i32, %arg1 : i32, i32, i32
  }
  func.func @transform_1(%arg0: i32, %arg1: i32, %arg2: i32) -> (i32, i32) {
    %c0_i32 = arith.constant 0 : i32
    %c0_i32_0 = arith.constant 0 : i32
    return %arg2, %c0_i32 : i32, i32
  }
  func.func @transform_2(%arg0: i32, %arg1: i32, %arg2: i32) -> (i32, i32) {
    %c0_i32 = arith.constant 0 : i32
    %c0_i32_0 = arith.constant 0 : i32
    return %arg2, %c0_i32 : i32, i32
  }
  func.func @transform_3(%arg0: i32, %arg1: i32, %arg2: i32) -> (i32, i32, i32) {
    %c0_i32 = arith.constant 0 : i32
    return %arg0, %arg2, %arg1 : i32, i32, i32
  }
}

</mosaic_0001>

<llo_original>
// kernel: tpu_custom_call.1
$region0: #{tpu_custom_call.1}
  #allocation0 [shape = 'u32[]', space=smem, size = 0x4, offset = 0x4, fixed_abs, tag = 'smem constant byte address 0x4 - core index']
  #allocation1 [shape = 'u32[144,128]{1,0:T(1,128)}', space=vmem, size = 0x12000, scoped, tag = 'internal scratch']
  %s0 = inlined_call_operand.vmem [shape: f32[2,4,256], index: 0, kind: input, shape index: {}]
  %s1 = inlined_call_operand.vmem [shape: f32[8,4], index: 1, kind: input, shape index: {}]
  %s2 = inlined_call_operand.vmem [shape: f32[8,1], index: 2, kind: input, shape index: {}]
  %s3 = inlined_call_operand.hbm [shape: f32[2,8,256], index: 3, kind: output, shape index: {}]
  %s4 = sld [smem:[#allocation0]]
  $region45: #{tpu_custom_call.1} parent=0
    _
  %s6 = ssub.s32 1, %s4
  %s7 = scalar_select 0, %s6, %s4
  $region1: #{tpu_custom_call.1} parent=0
    #allocation2 [shape = 'u8[16384]{0}', space=vmem, size = 0x4000, scoped, tag = 'output window, operand 0']
    #allocation3 [shape = 's32[2]{0}', space=sflag, size = 0x8, scoped, tag = 'scoped memory for tpu_custom_call.1']
    %8 = vsyncpa [#allocation3], 0
    %s9 = scalar_lea.sflag [#allocation3], 1
    %10 = vsyncpa %s9, 0
    loop: start=0, step=1, limit=4
    $region2: #{tpu_custom_call.1} parent=1 // loop_pre_header
      _
    $region3: #{tpu_custom_call.1} parent=1 // loop_header
      %s12 = sphi 0, %s16
      %p13 = scmp.ge.s32.totalorder %s12, 4
      %s19 = sphi 0, %s38
      %s20 = sphi 0, %s34
      %s21 = sphi 0, %s30
      %s22 = sphi 0, %s19
      %s23 = sphi 0, %s20
      %s24 = sphi 0, %s21
      %s25 = sphi 0, %s22
      %s26 = sphi 0, %s23
      %s27 = sphi 0, %s24
      %s43 = sphi 0, %s45
      %s46 = sphi 0, %s43
      %s47 = sphi 0, %s46
      %s63 = sphi 0, %s47
      %s69 = sphi 0, %s71
      %s72 = sphi 0, %s69
      %s73 = sphi 0, %s72
      %s89 = sphi 0, %s73
      %s95 = sphi 0, %s97
      %s98 = sphi 0, %s95
      %s99 = sphi 0, %s98
      %s115 = sphi 0, %s99
      %s125 = sphi 0, %s127
      %s128 = sphi 0, %s125
      %s129 = sphi 0, %s128
      %s145 = sphi 0, %s129
    $region4: #{tpu_custom_call.1} parent=1 // loop_header_branch
      %15 = sbr.rel (%p13) target = $region8
    $region5: #{tpu_custom_call.1} parent=1 // loop_body
      %s17 = ssub.s32 %s12, 1
      %s18 = ssub.s32 %s12, 2
      %s28 = sadd.s32 1, %s21
      %p29 = scmp.ge.s32.totalorder %s28, 1
      %s30 = scalar_select %p29, 0, %s28
      %s31 = sadd.s32 1, %s20
      %s32 = scalar_select %p29, %s31, %s20
      %p33 = scmp.ge.s32.totalorder %s32, 1
      %s34 = scalar_select %p33, 0, %s32
      %s35 = sadd.s32 1, %s19
      %s36 = scalar_select %p33, %s35, %s19
      %p37 = scmp.ge.s32.totalorder %s36, 2
      %s38 = scalar_select %p37, 0, %s36
      %s39 = ssub.s32 %s19, %s38
      %s40 = ssub.s32 %s20, %s34
      %s41 = sor.u32 %s39, %s40
      %p42 = scmp.eq.s32.totalorder %s41, 0
      %s44 = sadd.s32 %s43, 1
      %s45 = scalar_select %p42, %s43, %s44
      %p48 = pneg %p42
      %p49 = scmp.eq.s32.totalorder %s12, 1
      %p50 = por %p48, %p49
      %p51 = scmp.ne.s32.totalorder %s43, %s46
      %p52 = scmp.eq.s32.totalorder %s12, 0
      %p53 = por %p51, %p52
      %p54 = scmp.ne.s32.totalorder %s43, %s46
      %p55 = scmp.eq.s32.totalorder %s17, 1
      %p56 = por %p54, %p55
      %p57 = scmp.ne.s32.totalorder %s46, %s47
      %p58 = scmp.eq.s32.totalorder %s17, 0
      %p59 = por %p57, %p58
      %p60 = scmp.ne.s32.totalorder %s46, %s47
      %p61 = scmp.eq.s32.totalorder %s18, 1
      %p62 = por %p60, %p61
      %p64 = scmp.ne.s32.totalorder %s47, %s63
      %p65 = scmp.eq.s32.totalorder %s18, 0
      %p66 = por %p64, %p65
      %s67 = ssub.s32 %s21, %s30
      %p68 = scmp.eq.s32.totalorder %s67, 0
      %s70 = sadd.s32 %s69, 1
      %s71 = scalar_select %p68, %s69, %s70
      %p74 = pneg %p68
      %p75 = scmp.eq.s32.totalorder %s12, 1
      %p76 = por %p74, %p75
      %p77 = scmp.ne.s32.totalorder %s69, %s72
      %p78 = scmp.eq.s32.totalorder %s12, 0
      %p79 = por %p77, %p78
      %p80 = scmp.ne.s32.totalorder %s69, %s72
      %p81 = scmp.eq.s32.totalorder %s17, 1
      %p82 = por %p80, %p81
      %p83 = scmp.ne.s32.totalorder %s72, %s73
      %p84 = scmp.eq.s32.totalorder %s17, 0
      %p85 = por %p83, %p84
      %p86 = scmp.ne.s32.totalorder %s72, %s73
      %p87 = scmp.eq.s32.totalorder %s18, 1
      %p88 = por %p86, %p87
      %p90 = scmp.ne.s32.totalorder %s73, %s89
      %p91 = scmp.eq.s32.totalorder %s18, 0
      %p92 = por %p90, %p91
      %s93 = ssub.s32 %s21, %s30
      %p94 = scmp.eq.s32.totalorder %s93, 0
      %s96 = sadd.s32 %s95, 1
      %s97 = scalar_select %p94, %s95, %s96
      %p100 = pneg %p94
      %p101 = scmp.eq.s32.totalorder %s12, 1
      %p102 = por %p100, %p101
      %p103 = scmp.ne.s32.totalorder %s95, %s98
      %p104 = scmp.eq.s32.totalorder %s12, 0
      %p105 = por %p103, %p104
      %p106 = scmp.ne.s32.totalorder %s95, %s98
      %p107 = scmp.eq.s32.totalorder %s17, 1
      %p108 = por %p106, %p107
      %p109 = scmp.ne.s32.totalorder %s98, %s99
      %p110 = scmp.eq.s32.totalorder %s17, 0
      %p111 = por %p109, %p110
      %p112 = scmp.ne.s32.totalorder %s98, %s99
      %p113 = scmp.eq.s32.totalorder %s18, 1
      %p114 = por %p112, %p113
      %p116 = scmp.ne.s32.totalorder %s99, %s115
      %p117 = scmp.eq.s32.totalorder %s18, 0
      %p118 = por %p116, %p117
      %s119 = ssub.s32 %s19, %s38
      %s120 = ssub.s32 %s21, %s30
      %s121 = sor.u32 %s119, %s120
      %s122 = ssub.s32 %s20, %s34
      %s123 = sor.u32 %s121, %s122
      %p124 = scmp.eq.s32.totalorder %s123, 0
      %s126 = sadd.s32 %s125, 1
      %s127 = scalar_select %p124, %s125, %s126
      %p130 = pneg %p124
      %p131 = scmp.eq.s32.totalorder %s12, 1
      %p132 = por %p130, %p131
      %p133 = scmp.ne.s32.totalorder %s125, %s128
      %p134 = scmp.eq.s32.totalorder %s12, 0
      %p135 = por %p133, %p134
      %p136 = scmp.ne.s32.totalorder %s125, %s128
      %p137 = scmp.eq.s32.totalorder %s17, 1
      %p138 = por %p136, %p137
      %p139 = scmp.ne.s32.totalorder %s128, %s129
      %p140 = scmp.eq.s32.totalorder %s17, 0
      %p141 = por %p139, %p140
      %p142 = scmp.ne.s32.totalorder %s128, %s129
      %p143 = scmp.eq.s32.totalorder %s18, 1
      %p144 = por %p142, %p143
      %p146 = scmp.ne.s32.totalorder %s129, %s145
      %p147 = scmp.eq.s32.totalorder %s18, 0
      %p148 = por %p146, %p147
      %p149 = scmp.le.s32.totalorder 1, %s12
      %p150 = scmp.lt.s32.totalorder %s12, 3
      %p151 = pnand %p149, %p150
      %p152 = pneg %p151
      // Predicated region
      $region9: #{tpu_custom_call.1} parent=5 // pred_check
        _
      $region10: #{tpu_custom_call.1} parent=5 // pred_check_branch
        %154 = sbr.rel (%p151) target = $region12
      $region11: #{tpu_custom_call.1} parent=5 // pred_region
        %s155 = ssub.s32 %s12, 1
        // Predicated region
        $region13: #{tpu_custom_call.1} parent=11 // pred_check
          %p156 = pneg %p85
        $region14: #{tpu_custom_call.1} parent=11 // pred_check_branch
          %158 = sbr.rel (%p156) target = $region16
        $region15: #{tpu_custom_call.1} parent=11 // pred_region
          %p159 = scmp.lt.s32.totalorder %s24, 0
          %s160 = scalar_select %p159, %s24, 0
          %s161 = smul.addr %s160, 8
          %s162 = scalar_lea.vmem %s1, %s161
        $region16: #{tpu_custom_call.1} parent=11 // pred_fallthru
          _
        // Predicated region
        $region17: #{tpu_custom_call.1} parent=11 // pred_check
          %p163 = pneg %p111
        $region18: #{tpu_custom_call.1} parent=11 // pred_check_branch
          %165 = sbr.rel (%p163) target = $region20
        $region19: #{tpu_custom_call.1} parent=11 // pred_region
          %p166 = scmp.lt.s32.totalorder %s24, 0
          %s167 = scalar_select %p166, %s24, 0
          %s168 = smul.addr %s167, 8
          %s169 = scalar_lea.vmem %s2, %s168
        $region20: #{tpu_custom_call.1} parent=11 // pred_fallthru
          _
      $region12: #{tpu_custom_call.1} parent=5 // pred_fallthru
        _
      %p170 = scmp.lt.s32.totalorder %s12, 2
      // Predicated region
      $region21: #{tpu_custom_call.1} parent=5 // pred_check
        %p171 = pneg %p170
      $region22: #{tpu_custom_call.1} parent=5 // pred_check_branch
        %173 = sbr.rel (%p171) target = $region24
      $region23: #{tpu_custom_call.1} parent=5 // pred_region
        // Predicated region
        $region25: #{tpu_custom_call.1} parent=23 // pred_check
          %p174 = pneg %p53
        $region26: #{tpu_custom_call.1} parent=23 // pred_check_branch
          %176 = sbr.rel (%p174) target = $region28
        $region27: #{tpu_custom_call.1} parent=23 // pred_region
          %s177 = smul.u32 2, %s20
          %p178 = scmp.lt.s32.totalorder %s19, 1
          %s179 = scalar_select %p178, %s19, 1
          %p180 = scmp.lt.s32.totalorder %s177, 1
          %s181 = scalar_select %p180, %s177, 1
          %s182 = smul.addr %s179, 2
          %s183 = sadd.s32 %s181, %s182
          %s184 = smul.addr %s183, 4
          %s185 = scalar_lea.vmem %s0, %s184
          %s186 = smul.u32 2, %s20
        $region28: #{tpu_custom_call.1} parent=23 // pred_fallthru
          _
      $region24: #{tpu_custom_call.1} parent=5 // pred_fallthru
        _
      %p187 = scmp.le.s32.totalorder 1, %s12
      %p188 = scmp.lt.s32.totalorder %s12, 3
      %p189 = pnand %p187, %p188
      %p190 = pneg %p189
      // Predicated region
      $region29: #{tpu_custom_call.1} parent=5 // pred_check
        _
      $region30: #{tpu_custom_call.1} parent=5 // pred_check_branch
        %192 = sbr.rel (%p189) target = $region32
      $region31: #{tpu_custom_call.1} parent=5 // pred_region
        %s193 = ssub.s32 %s12, 1
        %s194 = smul.u32 2, %s23
        %p195 = scmp.lt.s32.totalorder %s22, 1
        %s196 = scalar_select %p195, %s22, 1
        %p197 = scmp.lt.s32.totalorder %s194, 1
        %s198 = scalar_select %p197, %s194, 1
        %s199 = smul.addr %s196, 2
        %s200 = sadd.s32 %s198, %s199
        %s201 = smul.addr %s200, 4
        %s202 = scalar_lea.vmem %s0, %s201
        %p203 = pneg %p59
        %p204 = pneg %p56
        %p205 = scmp.lt.s32.totalorder %s24, 0
        %s206 = scalar_select %p205, %s24, 0
        %s207 = smul.addr %s206, 8
        %s208 = scalar_lea.vmem %s1, %s207
        %p209 = pneg %p85
        %p210 = pneg %p82
        %p211 = scmp.lt.s32.totalorder %s24, 0
        %s212 = scalar_select %p211, %s24, 0
        %s213 = smul.addr %s212, 8
        %s214 = scalar_lea.vmem %s2, %s213
        %p215 = pneg %p111
        %p216 = pneg %p108
        %p217 = pneg %p141
        %p218 = pneg %p138
        %s219 = sand.u32 %s128, 1
        %s220 = scalar_lea.sflag [#allocation3], %s219
        %s221 = sand.u32 %s128, 1
        %s222 = smul.addr %s221, 16
        %s223 = scalar_lea.vmem [#allocation2], %s222
        %s224 = smul.u32 2, %s23
        %p225 = scmp.lt.s32.totalorder %s22, 1
        %s226 = scalar_select %p225, %s22, 1
        %p227 = scmp.lt.s32.totalorder %s224, 1
        %s228 = scalar_select %p227, %s224, 1
        %s229 = smul.addr %s226, 2
        %s230 = sadd.s32 %s228, %s229
        %s231 = smul.addr %s230, 4
        %s232 = scalar_lea.vmem %s0, %s231
        %s233 = smul.u32 2, %s23
        %p234 = scmp.lt.s32.totalorder %s24, 0
        %s235 = scalar_select %p234, %s24, 0
        %s236 = smul.addr %s235, 8
        %s237 = scalar_lea.vmem %s1, %s236
        %p238 = scmp.lt.s32.totalorder %s24, 0
        %s239 = scalar_select %p238, %s24, 0
        %s240 = smul.addr %s239, 8
        %s241 = scalar_lea.vmem %s2, %s240
        %s242 = smul.u32 2, %s23
        %v243 = vld [vmem:[%s237] sm:$0xff]
        %v244 = vld [vmem:[%s241] sm:$0xff]
        %v245 = vld [vmem:[%s232] sm:$0xff]
        %247 = vset.pattern.permute.xlu0 0
        %248 = vperm.xlu0 %247, %v244
        %v249 = vpop.permute.xlu0 %248
        %v252 = vcombine.high %v245, %v245
        %vm253 = vcmask 31744
        %v255 = vsel %vm253, %v243, 0
        %vm257 = vcmask 1043456
        %v258 = vsel %vm257, %v245, 0
        %v260 = vsel %vm257, %v252, 0
        %262 = vmatprep.subr.mxu0 %v260
        %263 = vmatpush1.msra.mxu0 %v258
        %264 = vmatprep.subr.mxu0 0.0
        %265 = vmatpush1.msra.mxu0 0.0
        %266 = vmatprep.subr.mxu0 0.0
        %267 = vmatpush1.msra.mxu0 0.0
        %268 = vmatprep.subr.mxu0 0.0
        %269 = vmatpush1.msra.mxu0 0.0
        %270 = vmatprep.subr.mxu0 0.0
        %271 = vmatpush1.msra.mxu0 0.0
        %272 = vmatprep.subr.mxu0 0.0
        %273 = vmatpush1.msra.mxu0 0.0
        %274 = vmatprep.subr.mxu0 0.0
        %275 = vmatpush1.msra.mxu0 0.0
        %276 = vmatprep.subr.mxu0 0.0
        %277 = vmatpush1.msra.mxu0 0.0
        %278 = vmatprep.subr.mxu0 0.0
        %279 = vmatpush1.msra.mxu0 0.0
        %280 = vmatprep.subr.mxu0 0.0
        %281 = vmatpush1.msra.mxu0 0.0
        %282 = vmatprep.subr.mxu0 0.0
        %283 = vmatpush1.msra.mxu0 0.0
        %284 = vmatprep.subr.mxu0 0.0
        %285 = vmatpush1.msra.mxu0 0.0
        %286 = vmatprep.subr.mxu0 0.0
        %287 = vmatpush1.msra.mxu0 0.0
        %288 = vmatprep.subr.mxu0 0.0
        %289 = vmatpush1.msra.mxu0 0.0
        %290 = vmatprep.subr.mxu0 0.0
        %291 = vmatpush1.msra.mxu0 0.0
        %292 = vmatprep.subr.mxu0 0.0
        %293 = vmatpush1.msra.mxu0 0.0
        %294 = vmatprep.subr.mxu0 0.0
        %295 = vmatpush1.msra.mxu0 0.0
        %296 = vmatprep.subr.mxu0 0.0
        %297 = vmatpush1.msra.mxu0 0.0
        %298 = vmatprep.subr.mxu0 0.0
        %299 = vmatpush1.msra.mxu0 0.0
        %300 = vmatprep.subr.mxu0 0.0
        %301 = vmatpush1.msra.mxu0 0.0
        %302 = vmatprep.subr.mxu0 0.0
        %303 = vmatpush1.msra.mxu0 0.0
        %304 = vmatprep.subr.mxu0 0.0
        %305 = vmatpush1.msra.mxu0 0.0
        %306 = vmatprep.subr.mxu0 0.0
        %307 = vmatpush1.msra.mxu0 0.0
        %308 = vmatprep.subr.mxu0 0.0
        %309 = vmatpush1.msra.mxu0 0.0
        %310 = vmatprep.subr.mxu0 0.0
        %311 = vmatpush1.msra.mxu0 0.0
        %312 = vmatprep.subr.mxu0 0.0
        %313 = vmatpush1.msra.mxu0 0.0
        %314 = vmatprep.subr.mxu0 0.0
        %315 = vmatpush1.msra.mxu0 0.0
        %316 = vmatprep.subr.mxu0 0.0
        %317 = vmatpush1.msra.mxu0 0.0
        %318 = vmatprep.subr.mxu0 0.0
        %319 = vmatpush1.msra.mxu0 0.0
        %320 = vmatprep.subr.mxu0 0.0
        %321 = vmatpush1.msra.mxu0 0.0
        %322 = vmatprep.subr.mxu0 0.0
        %323 = vmatpush1.msra.mxu0 0.0
        %324 = vmatprep.subr.mxu0 0.0
        %325 = vmatpush1.msra.mxu0 0.0
        %326 = vmatprep.mubr.f32.mxu0 0.0
        %327 = vmatmul.mubr.f32.gmra.mrb[0].mxu0 %v255
        %v328 = vpop.f32.mrb[0].mxu0
        %v329 = vadd.f32 %v249, %v328
        %v330 = vpop.f32.mrb[0].mxu0
        %v331 = vadd.f32 %v249, %v330
        %332 = vdwg.mxu0
        %333 = vst [vmem:[%s223] sm:$0xff] %v329
        %334 = vst [vmem:[%s223 + $0x8] sm:$0xff] %v331
        %s335 = sand.u32 %s128, 1
        %s336 = scalar_lea.sflag [#allocation3], %s335
        %s337 = sand.u32 %s128, 1
        %s338 = smul.addr %s337, 16
        %s339 = scalar_lea.vmem [#allocation2], %s338
        // Predicated region
        $region33: #{tpu_custom_call.1} parent=31 // pred_check
          %p340 = pneg %p138
        $region34: #{tpu_custom_call.1} parent=31 // pred_check_branch
          %342 = sbr.rel (%p340) target = $region36
        $region35: #{tpu_custom_call.1} parent=31 // pred_region
          %s343 = smul.u32 2, %s23
          %s345 = ssub.s32 256, 256
          %346 = vsyncadd %s336, %s345
          %s347 = smul.addr %s24, 2
          %s348 = sadd.s32 %s343, %s347
          %s349 = smul.addr %s22, 2
          %s350 = sadd.s32 %s348, %s349
          %s351 = smul.addr %s350, 128
          %s352 = scalar_lea.hbm %s3, %s351
          %s354 = sshll.u32 %s339, 4
          %s355 = int_to_ptr.vmem [resolvable:$true] %s354
          %357 = dma.vmem_to_hbm [thread:$0]  %s355, 256, %s352, %s336
        $region36: #{tpu_custom_call.1} parent=31 // pred_fallthru
          _
      $region32: #{tpu_custom_call.1} parent=5 // pred_fallthru
        _
      %p358 = scmp.le.s32.totalorder 2, %s12
      // Predicated region
      $region37: #{tpu_custom_call.1} parent=5 // pred_check
        %p359 = pneg %p358
      $region38: #{tpu_custom_call.1} parent=5 // pred_check_branch
        %361 = sbr.rel (%p359) target = $region40
      $region39: #{tpu_custom_call.1} parent=5 // pred_region
        %s362 = ssub.s32 %s12, 2
        // Predicated region
        $region41: #{tpu_custom_call.1} parent=39 // pred_check
          %p363 = pneg %p144
        $region42: #{tpu_custom_call.1} parent=39 // pred_check_branch
          %365 = sbr.rel (%p363) target = $region44
        $region43: #{tpu_custom_call.1} parent=39 // pred_region
          %s366 = sand.u32 %s129, 1
          %s367 = scalar_lea.sflag [#allocation3], %s366
          %s368 = sand.u32 %s129, 1
          %s369 = smul.addr %s368, 16
          %s370 = scalar_lea.vmem [#allocation2], %s369
          %371 = dma.done %s367, 256
        $region44: #{tpu_custom_call.1} parent=39 // pred_fallthru
          _
      $region40: #{tpu_custom_call.1} parent=5 // pred_fallthru
        _
    $region6: #{tpu_custom_call.1} parent=1 // loop_footer
      %s16 = sadd.s32 1, %s12
    $region7: #{tpu_custom_call.1} parent=1 // loop_footer_branch
      %11 = sbr.rel target = $region3
    $region8: #{tpu_custom_call.1} parent=1 // loop_exit
      _
    %372 = vsyncpa [#allocation3], 1
    %s373 = scalar_lea.sflag [#allocation3], 1
    %374 = vsyncpa %s373, 1

// kernel: tpu_custom_call.1
$region0: #{tpu_custom_call.1}
  #allocation0 [shape = 'u32[]', space=smem, size = 0x4, offset = 0x4, fixed_abs, tag = 'smem constant byte address 0x4 - core index']
  #allocation1 [shape = 'u32[144,128]{1,0:T(1,128)}', space=vmem, size = 0x12000, scoped, tag = 'internal scratch']
  %s0 = inlined_call_operand.vmem [shape: f32[2,4,256], index: 0, kind: input, shape index: {}]
  %s1 = inlined_call_operand.vmem [shape: f32[8,4], index: 1, kind: input, shape index: {}]
  %s2 = inlined_call_operand.vmem [shape: f32[8,1], index: 2, kind: input, shape index: {}]
  %s3 = inlined_call_operand.hbm [shape: f32[2,8,256], index: 3, kind: output, shape index: {}]
  %s4 = sld [smem:[#allocation0]]
  $region45: #{tpu_custom_call.1} parent=0
    _
  %s6 = ssub.s32 1, %s4
  %s7 = scalar_select 0, %s6, %s4
  $region1: #{tpu_custom_call.1} parent=0
    #allocation2 [shape = 'u8[16384]{0}', space=vmem, size = 0x4000, scoped, tag = 'output window, operand 0']
    #allocation3 [shape = 's32[2]{0}', space=sflag, size = 0x8, scoped, tag = 'scoped memory for tpu_custom_call.1']
    %8 = vsyncpa [#allocation3], 0
    %s9 = scalar_lea.sflag [#allocation3], 1
    %10 = vsyncpa %s9, 0
    loop: start=0, step=1, limit=4
    $region2: #{tpu_custom_call.1} parent=1 // loop_pre_header
      _
    $region3: #{tpu_custom_call.1} parent=1 // loop_header
      %s12 = sphi 0, %s16
      %p13 = scmp.ge.s32.totalorder %s12, 4
      %s19 = sphi 0, %s38
      %s20 = sphi 0, %s34
      %s21 = sphi 0, %s30
      %s22 = sphi 0, %s19
      %s23 = sphi 0, %s20
      %s24 = sphi 0, %s21
      %s25 = sphi 0, %s22
      %s26 = sphi 0, %s23
      %s27 = sphi 0, %s24
      %s43 = sphi 0, %s45
      %s46 = sphi 0, %s43
      %s47 = sphi 0, %s46
      %s63 = sphi 0, %s47
      %s69 = sphi 0, %s71
      %s72 = sphi 0, %s69
      %s73 = sphi 0, %s72
      %s89 = sphi 0, %s73
      %s95 = sphi 0, %s97
      %s98 = sphi 0, %s95
      %s99 = sphi 0, %s98
      %s115 = sphi 0, %s99
      %s125 = sphi 0, %s127
      %s128 = sphi 0, %s125
      %s129 = sphi 0, %s128
      %s145 = sphi 0, %s129
    $region4: #{tpu_custom_call.1} parent=1 // loop_header_branch
      %15 = sbr.rel (%p13) target = $region8
    $region5: #{tpu_custom_call.1} parent=1 // loop_body
      %s17 = ssub.s32 %s12, 1
      %s18 = ssub.s32 %s12, 2
      %s28 = sadd.s32 1, %s21
      %p29 = scmp.ge.s32.totalorder %s28, 1
      %s30 = scalar_select %p29, 0, %s28
      %s31 = sadd.s32 1, %s20
      %s32 = scalar_select %p29, %s31, %s20
      %p33 = scmp.ge.s32.totalorder %s32, 1
      %s34 = scalar_select %p33, 0, %s32
      %s35 = sadd.s32 1, %s19
      %s36 = scalar_select %p33, %s35, %s19
      %p37 = scmp.ge.s32.totalorder %s36, 2
      %s38 = scalar_select %p37, 0, %s36
      %s39 = ssub.s32 %s19, %s38
      %s40 = ssub.s32 %s20, %s34
      %s41 = sor.u32 %s39, %s40
      %p42 = scmp.eq.s32.totalorder %s41, 0
      %s44 = sadd.s32 %s43, 1
      %s45 = scalar_select %p42, %s43, %s44
      %p48 = pneg %p42
      %p49 = scmp.eq.s32.totalorder %s12, 1
      %p50 = por %p48, %p49
      %p51 = scmp.ne.s32.totalorder %s43, %s46
      %p52 = scmp.eq.s32.totalorder %s12, 0
      %p53 = por %p51, %p52
      %p54 = scmp.ne.s32.totalorder %s43, %s46
      %p55 = scmp.eq.s32.totalorder %s17, 1
      %p56 = por %p54, %p55
      %p57 = scmp.ne.s32.totalorder %s46, %s47
      %p58 = scmp.eq.s32.totalorder %s17, 0
      %p59 = por %p57, %p58
      %p60 = scmp.ne.s32.totalorder %s46, %s47
      %p61 = scmp.eq.s32.totalorder %s18, 1
      %p62 = por %p60, %p61
      %p64 = scmp.ne.s32.totalorder %s47, %s63
      %p65 = scmp.eq.s32.totalorder %s18, 0
      %p66 = por %p64, %p65
      %s67 = ssub.s32 %s21, %s30
      %p68 = scmp.eq.s32.totalorder %s67, 0
      %s70 = sadd.s32 %s69, 1
      %s71 = scalar_select %p68, %s69, %s70
      %p74 = pneg %p68
      %p75 = scmp.eq.s32.totalorder %s12, 1
      %p76 = por %p74, %p75
      %p77 = scmp.ne.s32.totalorder %s69, %s72
      %p78 = scmp.eq.s32.totalorder %s12, 0
      %p79 = por %p77, %p78
      %p80 = scmp.ne.s32.totalorder %s69, %s72
      %p81 = scmp.eq.s32.totalorder %s17, 1
      %p82 = por %p80, %p81
      %p83 = scmp.ne.s32.totalorder %s72, %s73
      %p84 = scmp.eq.s32.totalorder %s17, 0
      %p85 = por %p83, %p84
      %p86 = scmp.ne.s32.totalorder %s72, %s73
      %p87 = scmp.eq.s32.totalorder %s18, 1
      %p88 = por %p86, %p87
      %p90 = scmp.ne.s32.totalorder %s73, %s89
      %p91 = scmp.eq.s32.totalorder %s18, 0
      %p92 = por %p90, %p91
      %s93 = ssub.s32 %s21, %s30
      %p94 = scmp.eq.s32.totalorder %s93, 0
      %s96 = sadd.s32 %s95, 1
      %s97 = scalar_select %p94, %s95, %s96
      %p100 = pneg %p94
      %p101 = scmp.eq.s32.totalorder %s12, 1
      %p102 = por %p100, %p101
      %p103 = scmp.ne.s32.totalorder %s95, %s98
      %p104 = scmp.eq.s32.totalorder %s12, 0
      %p105 = por %p103, %p104
      %p106 = scmp.ne.s32.totalorder %s95, %s98
      %p107 = scmp.eq.s32.totalorder %s17, 1
      %p108 = por %p106, %p107
      %p109 = scmp.ne.s32.totalorder %s98, %s99
      %p110 = scmp.eq.s32.totalorder %s17, 0
      %p111 = por %p109, %p110
      %p112 = scmp.ne.s32.totalorder %s98, %s99
      %p113 = scmp.eq.s32.totalorder %s18, 1
      %p114 = por %p112, %p113
      %p116 = scmp.ne.s32.totalorder %s99, %s115
      %p117 = scmp.eq.s32.totalorder %s18, 0
      %p118 = por %p116, %p117
      %s119 = ssub.s32 %s19, %s38
      %s120 = ssub.s32 %s21, %s30
      %s121 = sor.u32 %s119, %s120
      %s122 = ssub.s32 %s20, %s34
      %s123 = sor.u32 %s121, %s122
      %p124 = scmp.eq.s32.totalorder %s123, 0
      %s126 = sadd.s32 %s125, 1
      %s127 = scalar_select %p124, %s125, %s126
      %p130 = pneg %p124
      %p131 = scmp.eq.s32.totalorder %s12, 1
      %p132 = por %p130, %p131
      %p133 = scmp.ne.s32.totalorder %s125, %s128
      %p134 = scmp.eq.s32.totalorder %s12, 0
      %p135 = por %p133, %p134
      %p136 = scmp.ne.s32.totalorder %s125, %s128
      %p137 = scmp.eq.s32.totalorder %s17, 1
      %p138 = por %p136, %p137
      %p139 = scmp.ne.s32.totalorder %s128, %s129
      %p140 = scmp.eq.s32.totalorder %s17, 0
      %p141 = por %p139, %p140
      %p142 = scmp.ne.s32.totalorder %s128, %s129
      %p143 = scmp.eq.s32.totalorder %s18, 1
      %p144 = por %p142, %p143
      %p146 = scmp.ne.s32.totalorder %s129, %s145
      %p147 = scmp.eq.s32.totalorder %s18, 0
      %p148 = por %p146, %p147
      %p149 = scmp.le.s32.totalorder 1, %s12
      %p150 = scmp.lt.s32.totalorder %s12, 3
      %p151 = pnand %p149, %p150
      %p152 = pneg %p151
      // Predicated region
      $region9: #{tpu_custom_call.1} parent=5 // pred_check
        _
      $region10: #{tpu_custom_call.1} parent=5 // pred_check_branch
        %154 = sbr.rel (%p151) target = $region12
      $region11: #{tpu_custom_call.1} parent=5 // pred_region
        %s155 = ssub.s32 %s12, 1
        // Predicated region
        $region13: #{tpu_custom_call.1} parent=11 // pred_check
          %p156 = pneg %p85
        $region14: #{tpu_custom_call.1} parent=11 // pred_check_branch
          %158 = sbr.rel (%p156) target = $region16
        $region15: #{tpu_custom_call.1} parent=11 // pred_region
          %p159 = scmp.lt.s32.totalorder %s24, 0
          %s160 = scalar_select %p159, %s24, 0
          %s161 = smul.addr %s160, 8
          %s162 = scalar_lea.vmem %s1, %s161
        $region16: #{tpu_custom_call.1} parent=11 // pred_fallthru
          _
        // Predicated region
        $region17: #{tpu_custom_call.1} parent=11 // pred_check
          %p163 = pneg %p111
        $region18: #{tpu_custom_call.1} parent=11 // pred_check_branch
          %165 = sbr.rel (%p163) target = $region20
        $region19: #{tpu_custom_call.1} parent=11 // pred_region
          %p166 = scmp.lt.s32.totalorder %s24, 0
          %s167 = scalar_select %p166, %s24, 0
          %s168 = smul.addr %s167, 8
          %s169 = scalar_lea.vmem %s2, %s168
        $region20: #{tpu_custom_call.1} parent=11 // pred_fallthru
          _
      $region12: #{tpu_custom_call.1} parent=5 // pred_fallthru
        _
      %p170 = scmp.lt.s32.totalorder %s12, 2
      // Predicated region
      $region21: #{tpu_custom_call.1} parent=5 // pred_check
        %p171 = pneg %p170
      $region22: #{tpu_custom_call.1} parent=5 // pred_check_branch
        %173 = sbr.rel (%p171) target = $region24
      $region23: #{tpu_custom_call.1} parent=5 // pred_region
        // Predicated region
        $region25: #{tpu_custom_call.1} parent=23 // pred_check
          %p174 = pneg %p53
        $region26: #{tpu_custom_call.1} parent=23 // pred_check_branch
          %176 = sbr.rel (%p174) target = $region28
        $region27: #{tpu_custom_call.1} parent=23 // pred_region
          %s177 = smul.u32 2, %s20
          %p178 = scmp.lt.s32.totalorder %s19, 1
          %s179 = scalar_select %p178, %s19, 1
          %p180 = scmp.lt.s32.totalorder %s177, 1
          %s181 = scalar_select %p180, %s177, 1
          %s182 = smul.addr %s179, 2
          %s183 = sadd.s32 %s181, %s182
          %s184 = smul.addr %s183, 4
          %s185 = scalar_lea.vmem %s0, %s184
          %s186 = smul.u32 2, %s20
        $region28: #{tpu_custom_call.1} parent=23 // pred_fallthru
          _
      $region24: #{tpu_custom_call.1} parent=5 // pred_fallthru
        _
      %p187 = scmp.le.s32.totalorder 1, %s12
      %p188 = scmp.lt.s32.totalorder %s12, 3
      %p189 = pnand %p187, %p188
      %p190 = pneg %p189
      // Predicated region
      $region29: #{tpu_custom_call.1} parent=5 // pred_check
        _
      $region30: #{tpu_custom_call.1} parent=5 // pred_check_branch
        %192 = sbr.rel (%p189) target = $region32
      $region31: #{tpu_custom_call.1} parent=5 // pred_region
        %s193 = ssub.s32 %s12, 1
        %s194 = smul.u32 2, %s23
        %p195 = scmp.lt.s32.totalorder %s22, 1
        %s196 = scalar_select %p195, %s22, 1
        %p197 = scmp.lt.s32.totalorder %s194, 1
        %s198 = scalar_select %p197, %s194, 1
        %s199 = smul.addr %s196, 2
        %s200 = sadd.s32 %s198, %s199
        %s201 = smul.addr %s200, 4
        %s202 = scalar_lea.vmem %s0, %s201
        %p203 = pneg %p59
        %p204 = pneg %p56
        %p205 = scmp.lt.s32.totalorder %s24, 0
        %s206 = scalar_select %p205, %s24, 0
        %s207 = smul.addr %s206, 8
        %s208 = scalar_lea.vmem %s1, %s207
        %p209 = pneg %p85
        %p210 = pneg %p82
        %p211 = scmp.lt.s32.totalorder %s24, 0
        %s212 = scalar_select %p211, %s24, 0
        %s213 = smul.addr %s212, 8
        %s214 = scalar_lea.vmem %s2, %s213
        %p215 = pneg %p111
        %p216 = pneg %p108
        %p217 = pneg %p141
        %p218 = pneg %p138
        %s219 = sand.u32 %s128, 1
        %s220 = scalar_lea.sflag [#allocation3], %s219
        %s221 = sand.u32 %s128, 1
        %s222 = smul.addr %s221, 16
        %s223 = scalar_lea.vmem [#allocation2], %s222
        %s224 = smul.u32 2, %s23
        %p225 = scmp.lt.s32.totalorder %s22, 1
        %s226 = scalar_select %p225, %s22, 1
        %p227 = scmp.lt.s32.totalorder %s224, 1
        %s228 = scalar_select %p227, %s224, 1
        %s229 = smul.addr %s226, 2
        %s230 = sadd.s32 %s228, %s229
        %s231 = smul.addr %s230, 4
        %s232 = scalar_lea.vmem %s0, %s231
        %s233 = smul.u32 2, %s23
        %p234 = scmp.lt.s32.totalorder %s24, 0
        %s235 = scalar_select %p234, %s24, 0
        %s236 = smul.addr %s235, 8
        %s237 = scalar_lea.vmem %s1, %s236
        %p238 = scmp.lt.s32.totalorder %s24, 0
        %s239 = scalar_select %p238, %s24, 0
        %s240 = smul.addr %s239, 8
        %s241 = scalar_lea.vmem %s2, %s240
        %s242 = smul.u32 2, %s23
        %v243 = vld [vmem:[%s237] sm:$0xff]
        %v244 = vld [vmem:[%s241] sm:$0xff]
        %v245 = vld [vmem:[%s232] sm:$0xff]
        %247 = vset.pattern.permute.xlu0 0
        %248 = vperm.xlu0 %247, %v244
        %v249 = vpop.permute.xlu0 %248
        %v252 = vcombine.high %v245, %v245
        %vm253 = vcmask 31744
        %v255 = vsel %vm253, %v243, 0
        %vm257 = vcmask 1043456
        %v258 = vsel %vm257, %v245, 0
        %v260 = vsel %vm257, %v252, 0
        %262 = vmatprep.subr.mxu0 %v260
        %263 = vmatpush1.msra.mxu0 %v258
        %264 = vmatprep.subr.mxu0 0.0
        %265 = vmatpush1.msra.mxu0 0.0
        %266 = vmatprep.subr.mxu0 0.0
        %267 = vmatpush1.msra.mxu0 0.0
        %268 = vmatprep.subr.mxu0 0.0
        %269 = vmatpush1.msra.mxu0 0.0
        %270 = vmatprep.subr.mxu0 0.0
        %271 = vmatpush1.msra.mxu0 0.0
        %272 = vmatprep.subr.mxu0 0.0
        %273 = vmatpush1.msra.mxu0 0.0
        %274 = vmatprep.subr.mxu0 0.0
        %275 = vmatpush1.msra.mxu0 0.0
        %276 = vmatprep.subr.mxu0 0.0
        %277 = vmatpush1.msra.mxu0 0.0
        %278 = vmatprep.subr.mxu0 0.0
        %279 = vmatpush1.msra.mxu0 0.0
        %280 = vmatprep.subr.mxu0 0.0
        %281 = vmatpush1.msra.mxu0 0.0
        %282 = vmatprep.subr.mxu0 0.0
        %283 = vmatpush1.msra.mxu0 0.0
        %284 = vmatprep.subr.mxu0 0.0
        %285 = vmatpush1.msra.mxu0 0.0
        %286 = vmatprep.subr.mxu0 0.0
        %287 = vmatpush1.msra.mxu0 0.0
        %288 = vmatprep.subr.mxu0 0.0
        %289 = vmatpush1.msra.mxu0 0.0
        %290 = vmatprep.subr.mxu0 0.0
        %291 = vmatpush1.msra.mxu0 0.0
        %292 = vmatprep.subr.mxu0 0.0
        %293 = vmatpush1.msra.mxu0 0.0
        %294 = vmatprep.subr.mxu0 0.0
        %295 = vmatpush1.msra.mxu0 0.0
        %296 = vmatprep.subr.mxu0 0.0
        %297 = vmatpush1.msra.mxu0 0.0
        %298 = vmatprep.subr.mxu0 0.0
        %299 = vmatpush1.msra.mxu0 0.0
        %300 = vmatprep.subr.mxu0 0.0
        %301 = vmatpush1.msra.mxu0 0.0
        %302 = vmatprep.subr.mxu0 0.0
        %303 = vmatpush1.msra.mxu0 0.0
        %304 = vmatprep.subr.mxu0 0.0
        %305 = vmatpush1.msra.mxu0 0.0
        %306 = vmatprep.subr.mxu0 0.0
        %307 = vmatpush1.msra.mxu0 0.0
        %308 = vmatprep.subr.mxu0 0.0
        %309 = vmatpush1.msra.mxu0 0.0
        %310 = vmatprep.subr.mxu0 0.0
        %311 = vmatpush1.msra.mxu0 0.0
        %312 = vmatprep.subr.mxu0 0.0
        %313 = vmatpush1.msra.mxu0 0.0
        %314 = vmatprep.subr.mxu0 0.0
        %315 = vmatpush1.msra.mxu0 0.0
        %316 = vmatprep.subr.mxu0 0.0
        %317 = vmatpush1.msra.mxu0 0.0
        %318 = vmatprep.subr.mxu0 0.0
        %319 = vmatpush1.msra.mxu0 0.0
        %320 = vmatprep.subr.mxu0 0.0
        %321 = vmatpush1.msra.mxu0 0.0
        %322 = vmatprep.subr.mxu0 0.0
        %323 = vmatpush1.msra.mxu0 0.0
        %324 = vmatprep.subr.mxu0 0.0
        %325 = vmatpush1.msra.mxu0 0.0
        %326 = vmatprep.mubr.f32.mxu0 0.0
        %327 = vmatmul.mubr.f32.gmra.mrb[0].mxu0 %v255
        %v328 = vpop.f32.mrb[0].mxu0
        %v329 = vadd.f32 %v249, %v328
        %v330 = vpop.f32.mrb[0].mxu0
        %v331 = vadd.f32 %v249, %v330
        %332 = vdwg.mxu0
        %333 = vst [vmem:[%s223] sm:$0xff] %v329
        %334 = vst [vmem:[%s223 + $0x8] sm:$0xff] %v331
        %s335 = sand.u32 %s128, 1
        %s336 = scalar_lea.sflag [#allocation3], %s335
        %s337 = sand.u32 %s128, 1
        %s338 = smul.addr %s337, 16
        %s339 = scalar_lea.vmem [#allocation2], %s338
        // Predicated region
        $region33: #{tpu_custom_call.1} parent=31 // pred_check
          %p340 = pneg %p138
        $region34: #{tpu_custom_call.1} parent=31 // pred_check_branch
          %342 = sbr.rel (%p340) target = $region36
        $region35: #{tpu_custom_call.1} parent=31 // pred_region
          %s343 = smul.u32 2, %s23
          %s345 = ssub.s32 256, 256
          %346 = vsyncadd %s336, %s345
          %s347 = smul.addr %s24, 2
          %s348 = sadd.s32 %s343, %s347
          %s349 = smul.addr %s22, 2
          %s350 = sadd.s32 %s348, %s349
          %s351 = smul.addr %s350, 128
          %s352 = scalar_lea.hbm %s3, %s351
          %s354 = sshll.u32 %s339, 4
          %s355 = int_to_ptr.vmem [resolvable:$true] %s354
          %357 = dma.vmem_to_hbm [thread:$0]  %s355, 256, %s352, %s336
        $region36: #{tpu_custom_call.1} parent=31 // pred_fallthru
          _
      $region32: #{tpu_custom_call.1} parent=5 // pred_fallthru
        _
      %p358 = scmp.le.s32.totalorder 2, %s12
      // Predicated region
      $region37: #{tpu_custom_call.1} parent=5 // pred_check
        %p359 = pneg %p358
      $region38: #{tpu_custom_call.1} parent=5 // pred_check_branch
        %361 = sbr.rel (%p359) target = $region40
      $region39: #{tpu_custom_call.1} parent=5 // pred_region
        %s362 = ssub.s32 %s12, 2
        // Predicated region
        $region41: #{tpu_custom_call.1} parent=39 // pred_check
          %p363 = pneg %p144
        $region42: #{tpu_custom_call.1} parent=39 // pred_check_branch
          %365 = sbr.rel (%p363) target = $region44
        $region43: #{tpu_custom_call.1} parent=39 // pred_region
          %s366 = sand.u32 %s129, 1
          %s367 = scalar_lea.sflag [#allocation3], %s366
          %s368 = sand.u32 %s129, 1
          %s369 = smul.addr %s368, 16
          %s370 = scalar_lea.vmem [#allocation2], %s369
          %371 = dma.done %s367, 256
        $region44: #{tpu_custom_call.1} parent=39 // pred_fallthru
          _
      $region40: #{tpu_custom_call.1} parent=5 // pred_fallthru
        _
    $region6: #{tpu_custom_call.1} parent=1 // loop_footer
      %s16 = sadd.s32 1, %s12
    $region7: #{tpu_custom_call.1} parent=1 // loop_footer_branch
      %11 = sbr.rel target = $region3
    $region8: #{tpu_custom_call.1} parent=1 // loop_exit
      _
    %372 = vsyncpa [#allocation3], 1
    %s373 = scalar_lea.sflag [#allocation3], 1
    %374 = vsyncpa %s373, 1

</llo_original>
